<compile_context>
chip_gen: v6e
topology: v6e:2x2x1
jax: 0.10.0
libtpu: 0.0.40
codegen_flags: <defaults>
</compile_context>

<pallas_src>
import functools

import jax
import jax.numpy as jnp
from jax.experimental import pallas as pl
from jax.experimental.pallas import tpu as pltpu


# ----------------------------- Pallas kernel --------------------------------
def _layernorm_kernel(x_ref, gamma_ref, beta_ref, o_ref, *, eps):
    # x_ref: (TR, D) tile of rows; gamma/beta: (1, D) f32 params (broadcast).
    x = x_ref[...].astype(jnp.float32)
    d = x.shape[-1]
    inv_d = 1.0 / d
    # Single-pass stats: both reductions read the same live f32 tile.
    s1 = jnp.sum(x, axis=-1, keepdims=True)
    s2 = jnp.sum(x * x, axis=-1, keepdims=True)
    mean = s1 * inv_d
    var = jnp.maximum(s2 * inv_d - mean * mean, 0.0)   # biased, like torch
    inv = jax.lax.rsqrt(var + eps)
    y = (x - mean) * inv * gamma_ref[...] + beta_ref[...]
    o_ref[...] = y.astype(o_ref.dtype)


def _sublane_pack(dtype):
    # f32 -> 8 rows/vreg, bf16 -> 16, int8/fp8 -> 32 (vreg identical on all gens).
    return max(8, 32 // jnp.dtype(dtype).itemsize)


def _choose_row_tile(rows, d, dtype, *, target_f32_block_bytes=4 << 20, max_rows=2048):
    """Largest row tile (multiple of sublane pack) under an *f32* byte budget.

    The budget is measured in f32 bytes because the kernel upcasts the tile to
    f32 internally; for bf16/int8 inputs that temporary (not the input block)
    dominates VMEM. ~4 MiB f32 blocks sit at ~85% of HBM roofline (measured
    512-1024 row tiles saturate) while leaving headroom on v7x's 64 MiB/TC.
    """
    sub = _sublane_pack(dtype)
    tr = max(1, target_f32_block_bytes // max(d * 4, 1))
    tr = min(tr, max_rows)
    rows_up = ((rows + sub - 1) // sub) * sub
    tr = min(tr, max(rows_up, sub))
    tr = max(sub, (tr // sub) * sub)
    return tr
    # TODO(synk): for extreme D (d * 4 * sublane_pack beyond the VMEM budget)
    # split the feature axis over a second grid dim with a two-pass reduction.


def _vmem_limit_bytes(tr, d, in_itemsize, out_itemsize):
    """Budget VMEM from the actual working set instead of a flat constant."""
    blk_in = tr * d * in_itemsize
    blk_out = tr * d * out_itemsize
    f32_tmp = tr * d * 4          # one live f32 tile + broadcast/result margin
    params = 2 * d * 4
    working = 2 * blk_in + 2 * blk_out + 3 * f32_tmp + params
    limit = int(working * 1.5) + (1 << 20)
    return max(8 << 20, min(limit, 48 << 20))


def layernorm_pallas(x, gamma, beta, *, eps=1e-5, row_tile=None):
    """LayerNorm over the last axis of x (any leading shape)."""
    orig_shape = x.shape
    d = orig_shape[-1]
    rows = 1
    for s in orig_shape[:-1]:
        rows *= s
    x2 = x.reshape(rows, d)
    gamma2 = gamma.reshape(1, d).astype(jnp.float32)
    beta2 = beta.reshape(1, d).astype(jnp.float32)

    tr = row_tile if row_tile is not None else _choose_row_tile(rows, d, x.dtype)

    # Non-dividing grid: Pallas clips the last partial block. OOB rows compute
    # garbage but their stores are dropped; no pad/slice HBM round-trip.
    grid = (pl.cdiv(rows, tr),)

    itemsize = jnp.dtype(x.dtype).itemsize
    cost = pl.CostEstimate(
        flops=10 * rows * d,                 # sums, squares, normalize, affine
        transcendentals=rows,                # one rsqrt per row
        bytes_accessed=2 * rows * d * itemsize + 2 * d * 4,
    )

    # TODO(synk): if D is not a multiple of 128 in production, pad/pack the
    # feature axis to keep the out_spec lane-dense (masked vst otherwise).
    out = pl.pallas_call(
        functools.partial(_layernorm_kernel, eps=eps),
        out_shape=jax.ShapeDtypeStruct((rows, d), x.dtype),
        grid_spec=pltpu.PrefetchScalarGridSpec(
            num_scalar_prefetch=0,
            grid=grid,
            in_specs=[
                pl.BlockSpec((tr, d), lambda i: (i, 0)),
                pl.BlockSpec((1, d), lambda i: (0, 0)),
                pl.BlockSpec((1, d), lambda i: (0, 0)),
            ],
            out_specs=pl.BlockSpec((tr, d), lambda i: (i, 0)),
        ),
        compiler_params=pltpu.CompilerParams(
            # Row grid shards across the two TensorCores on v7x (mem-bound:
            # both cores must issue DMAs to approach chip HBM roofline).
            dimension_semantics=("parallel",),
            vmem_limit_bytes=_vmem_limit_bytes(tr, d, itemsize, itemsize),
        ),
        cost_estimate=cost,
    )(x2, gamma2, beta2)

    return out.reshape(orig_shape)


# ------------------------------ PreNorm wrapper ------------------------------
class PreNorm:
    """JAX/Pallas port of the PyTorch PreNorm module.

    norm / norm_context parameters are (gamma, beta) pairs; fn is any callable
    fn(x, **kwargs). The LayerNorm hot path runs in the Pallas kernel above.
    """

    def __init__(self, dim, fn, context_dim=None):
        self.fn = fn
        # nn.LayerNorm defaults: gamma=1, beta=0.
        self.norm = (jnp.ones((dim,), jnp.float32), jnp.zeros((dim,), jnp.float32))
        self.norm_context = (
            (jnp.ones((context_dim,), jnp.float32), jnp.zeros((context_dim,), jnp.float32))
            if context_dim is not None
            else None
        )

    def __call__(self, x, **kwargs):
        g, b = self.norm
        x = layernorm_pallas(x, g, b)
        if self.norm_context is not None:
            gc, bc = self.norm_context
            context = kwargs["context"]
            normed_context = layernorm_pallas(context, gc, bc)
            kwargs.update(context=normed_context)
        # TODO(synk): fn is arbitrary in PreNorm, so the downstream projections
        # (normed x @ W_q, normed context @ W_c) cannot be fused generically;
        # for a fixed attention fn, fold them into this pallas_call (extra N/K
        # grid axis + f32 VMEM accumulator) to avoid the HBM round-trip of the
        # normalized activation.
        return self.fn(x, **kwargs)


# --------------------------------- demo --------------------------------------
if __name__ == "__main__":
    key = jax.random.PRNGKey(0)
    kx, kc, kw1, kw2 = jax.random.split(key, 4)

    B, N, D = 2, 8, 32          # x: (batch, seq, dim)
    M, CD = 8, 16               # context: (batch, ctx_seq, context_dim)

    x = jax.random.normal(kx, (B, N, D), jnp.float32)
    context = jax.random.normal(kc, (B, M, CD), jnp.float32)

    # The wrapped fn (glue, plain JAX): a tiny cross-attention-flavoured mix.
    W_q = jax.random.normal(kw1, (D, D), jnp.float32) * 0.1
    W_c = jax.random.normal(kw2, (CD, D), jnp.float32) * 0.1

    def fn(x, context=None):
        scores = jnp.einsum("bnd,bmd->bnm", x @ W_q, context @ W_c)
        attn = jax.nn.softmax(scores, axis=-1)
        return x + jnp.einsum("bnm,bmd->bnd", attn, context @ W_c)

    prenorm = PreNorm(D, fn, context_dim=CD)
    out = prenorm(x, context=context)
    jax.block_until_ready(out)

    # Reference check against plain-JAX layernorm (PyTorch-equivalent).
    def ln_ref(t):
        mu = t.mean(-1, keepdims=True)
        var = ((t - mu) ** 2).mean(-1, keepdims=True)
        return (t - mu) / jnp.sqrt(var + 1e-5)

    ref = fn(ln_ref(x), context=ln_ref(context))
    assert jnp.allclose(out, ref, atol=1e-4, rtol=1e-4)

    # Exercise the ragged-rows path (non-dividing grid, clipped last block).
    x_odd = jax.random.normal(kx, (3, 13, D), jnp.float32)
    y_odd = layernorm_pallas(x_odd, jnp.ones((D,), jnp.float32), jnp.zeros((D,), jnp.float32))
    jax.block_until_ready(y_odd)
    assert jnp.allclose(y_odd, ln_ref(x_odd), atol=1e-4, rtol=1e-4)

    # Exercise a forced-small tile so the grid has >1 step and a partial tail.
    y_tiled = layernorm_pallas(
        x_odd, jnp.ones((D,), jnp.float32), jnp.zeros((D,), jnp.float32), row_tile=16
    )
    jax.block_until_ready(y_tiled)
    assert jnp.allclose(y_tiled, ln_ref(x_odd), atol=1e-4, rtol=1e-4)

    print("KERNEL_OK")
</pallas_src>

<mosaic_0001>
module attributes {stable_mosaic.version = 11 : i64} {
  func.func @_layernorm_kernel(%arg0: i32, %arg1: memref<16x32xf32, #tpu.memory_space<vmem>>, %arg2: memref<1x32xf32, #tpu.memory_space<vmem>>, %arg3: memref<1x32xf32, #tpu.memory_space<vmem>>, %arg4: memref<16x32xf32, #tpu.memory_space<vmem>>) attributes {dimension_semantics = [#tpu.dimension_semantics<parallel>], iteration_bounds = array<i64: 1>, scalar_prefetch = 0 : i64, scratch_operands = 0 : i64, tpu.core_type = #tpu.core_type<tc>, window_params = [{transform_indices = @transform_0, window_bounds = array<i64: 16, 32>}, {pipeline_mode = #tpu.pipeline_mode<synchronous>, transform_indices = @transform_1, window_bounds = array<i64: 1, 32>}, {pipeline_mode = #tpu.pipeline_mode<synchronous>, transform_indices = @transform_2, window_bounds = array<i64: 1, 32>}, {transform_indices = @transform_3, window_bounds = array<i64: 16, 32>}]} {
    %c0 = arith.constant 0 : index
    %c0_0 = arith.constant 0 : index
    %0 = vector.load %arg1[%c0, %c0_0] : memref<16x32xf32, #tpu.memory_space<vmem>>, vector<16x32xf32>
    %cst = arith.constant dense<0.000000e+00> : vector<16xf32>
    %1 = vector.multi_reduction <add>, %0, %cst [1] : vector<16x32xf32> to vector<16xf32>
    %2 = vector.shape_cast %1 : vector<16xf32> to vector<16x1xf32>
    %3 = arith.mulf %0, %0 : vector<16x32xf32>
    %cst_1 = arith.constant dense<0.000000e+00> : vector<16xf32>
    %4 = vector.multi_reduction <add>, %3, %cst_1 [1] : vector<16x32xf32> to vector<16xf32>
    %5 = vector.shape_cast %4 : vector<16xf32> to vector<16x1xf32>
    %cst_2 = arith.constant 3.125000e-02 : f32
    %6 = vector.broadcast %cst_2 : f32 to vector<16x1xf32>
    %7 = arith.mulf %2, %6 : vector<16x1xf32>
    %cst_3 = arith.constant 3.125000e-02 : f32
    %8 = vector.broadcast %cst_3 : f32 to vector<16x1xf32>
    %9 = arith.mulf %5, %8 : vector<16x1xf32>
    %10 = arith.mulf %7, %7 : vector<16x1xf32>
    %11 = arith.subf %9, %10 : vector<16x1xf32>
    %cst_4 = arith.constant 0.000000e+00 : f32
    %12 = vector.broadcast %cst_4 : f32 to vector<16x1xf32>
    %13 = arith.maximumf %11, %12 : vector<16x1xf32>
    %cst_5 = arith.constant 9.99999974E-6 : f32
    %14 = vector.broadcast %cst_5 : f32 to vector<16x1xf32>
    %15 = arith.addf %13, %14 : vector<16x1xf32>
    %16 = math.rsqrt %15 : vector<16x1xf32>
    %17 = vector.broadcast %7 : vector<16x1xf32> to vector<16x32xf32>
    %18 = arith.subf %0, %17 : vector<16x32xf32>
    %19 = vector.broadcast %16 : vector<16x1xf32> to vector<16x32xf32>
    %20 = arith.mulf %18, %19 : vector<16x32xf32>
    %c0_6 = arith.constant 0 : index
    %c0_7 = arith.constant 0 : index
    %21 = vector.load %arg2[%c0_6, %c0_7] : memref<1x32xf32, #tpu.memory_space<vmem>>, vector<1x32xf32>
    %22 = vector.broadcast %21 : vector<1x32xf32> to vector<16x32xf32>
    %23 = arith.mulf %20, %22 : vector<16x32xf32>
    %c0_8 = arith.constant 0 : index
    %c0_9 = arith.constant 0 : index
    %24 = vector.load %arg3[%c0_8, %c0_9] : memref<1x32xf32, #tpu.memory_space<vmem>>, vector<1x32xf32>
    %25 = vector.broadcast %24 : vector<1x32xf32> to vector<16x32xf32>
    %26 = arith.addf %23, %25 : vector<16x32xf32>
    %c0_10 = arith.constant 0 : index
    %c0_11 = arith.constant 0 : index
    %27 = vector.load %arg4[%c0_10, %c0_11] : memref<16x32xf32, #tpu.memory_space<vmem>>, vector<16x32xf32>
    tpu.vector_store %arg4[%c0_10, %c0_11], %26 {strides = array<i32>} : memref<16x32xf32, #tpu.memory_space<vmem>>, vector<16x32xf32>,
    return
  }
  func.func @transform_0(%arg0: i32) -> (i32, i32) {
    %c0_i32 = arith.constant 0 : i32
    %c0_i32_0 = arith.constant 0 : i32
    return %arg0, %c0_i32 : i32, i32
  }
  func.func @transform_1(%arg0: i32) -> (i32, i32) {
    %c0_i32 = arith.constant 0 : i32
    %c0_i32_0 = arith.constant 0 : i32
    %c0_i32_1 = arith.constant 0 : i32
    return %c0_i32, %c0_i32_0 : i32, i32
  }
  func.func @transform_2(%arg0: i32) -> (i32, i32) {
    %c0_i32 = arith.constant 0 : i32
    %c0_i32_0 = arith.constant 0 : i32
    %c0_i32_1 = arith.constant 0 : i32
    return %c0_i32, %c0_i32_0 : i32, i32
  }
  func.func @transform_3(%arg0: i32) -> (i32, i32) {
    %c0_i32 = arith.constant 0 : i32
    %c0_i32_0 = arith.constant 0 : i32
    return %arg0, %c0_i32 : i32, i32
  }
}

</mosaic_0001>

<llo_original>
// kernel: tpu_custom_call.1
$region0: #{tpu_custom_call.1}
  #allocation0 [shape = 'u32[]', space=smem, size = 0x4, offset = 0x4, fixed_abs, tag = 'smem constant byte address 0x4 - core index']
  #allocation1 [shape = 'u32[144,128]{1,0:T(1,128)}', space=vmem, size = 0x12000, scoped, tag = 'internal scratch']
  %s0 = inlined_call_operand.hbm [shape: f32[16,32], index: 0, kind: input, shape index: {}]
  %s1 = inlined_call_operand.vmem [shape: f32[1,32], index: 1, kind: input, shape index: {}]
  %s2 = inlined_call_operand.vmem [shape: f32[1,32], index: 2, kind: input, shape index: {}]
  %s3 = inlined_call_operand.hbm [shape: f32[16,32], index: 3, kind: output, shape index: {}]
  %s4 = sld [smem:[#allocation0]]
  $region26: #{tpu_custom_call.1} parent=0
    _
  %s6 = ssub.s32 1, %s4
  %s7 = scalar_select 0, %s6, %s4
  $region1: #{tpu_custom_call.1} parent=0
    #allocation2 [shape = 'u8[8192]{0}', space=vmem, size = 0x2000, scoped, tag = 'input window, operand 0, single buffered']
    #allocation3 [shape = 's32[1]{0}', space=sflag, size = 0x4, scoped, tag = 'scoped memory for tpu_custom_call.1']
    #allocation4 [shape = 's32[1]{0}', space=sflag, size = 0x4, scoped, tag = 'scoped memory for tpu_custom_call.1']
    #allocation5 [shape = 'u8[8192]{0}', space=vmem, size = 0x2000, scoped, tag = 'output window, operand 0, single buffered']
    %8 = vsyncpa [#allocation3], 0
    %9 = vsyncpa [#allocation4], 0
    // Predicated region
    $region2: #{tpu_custom_call.1} parent=1 // pred_check
      _
    $region3: #{tpu_custom_call.1} parent=1 // pred_check_branch
      %11 = sbr.rel (0) target = $region5
    $region4: #{tpu_custom_call.1} parent=1 // pred_region
      %s13 = ssub.s32 256, 256
      %14 = vsyncadd [#allocation3], %s13
      %s15 = sshll.u32 [#allocation2], 4
      %s16 = int_to_ptr.vmem [resolvable:$true] %s15
      %21 = dma.hbm_to_vmem [thread:$0]  %s0, 256, %s16, [#allocation3], 128, 128, 8
    $region5: #{tpu_custom_call.1} parent=1 // pred_fallthru
      _
    // Predicated region
    $region6: #{tpu_custom_call.1} parent=1 // pred_check
      _
    $region7: #{tpu_custom_call.1} parent=1 // pred_check_branch
      %23 = sbr.rel (0) target = $region9
    $region8: #{tpu_custom_call.1} parent=1 // pred_region
      _
    $region9: #{tpu_custom_call.1} parent=1 // pred_fallthru
      _
    // Predicated region
    $region10: #{tpu_custom_call.1} parent=1 // pred_check
      _
    $region11: #{tpu_custom_call.1} parent=1 // pred_check_branch
      %25 = sbr.rel (0) target = $region13
    $region12: #{tpu_custom_call.1} parent=1 // pred_region
      _
    $region13: #{tpu_custom_call.1} parent=1 // pred_fallthru
      _
    // Predicated region
    $region14: #{tpu_custom_call.1} parent=1 // pred_check
      _
    $region15: #{tpu_custom_call.1} parent=1 // pred_check_branch
      %27 = sbr.rel (0) target = $region17
    $region16: #{tpu_custom_call.1} parent=1 // pred_region
      %28 = dma.done [#allocation3], 256
    $region17: #{tpu_custom_call.1} parent=1 // pred_fallthru
      _
    %v29 = vld [vmem:[#allocation2] sm:$0xff]
    %v30 = vld [vmem:[#allocation2 + $0x8] sm:$0xff]
    %vm31 = vcmask 261120
    %v32 = vsel %vm31, %v29, 0.0
    %33 = vadd.xlane.f32.xlu0 %v32
    %v34 = vpop.xlane.xlu0 %33
    %v35 = vsel %vm31, %v30, 0.0
    %36 = vadd.xlane.f32.xlu0 %v35
    %v37 = vpop.xlane.xlu0 %36
    %v38 = vmul.f32 %v29, %v29
    %v39 = vmul.f32 %v30, %v30
    %v40 = vsel %vm31, %v38, 0.0
    %41 = vadd.xlane.f32.xlu0 %v40
    %v42 = vpop.xlane.xlu0 %41
    %v43 = vsel %vm31, %v39, 0.0
    %44 = vadd.xlane.f32.xlu0 %v43
    %v45 = vpop.xlane.xlu0 %44
    %v46 = vmul.f32 %v34, 0.03125
    %v47 = vmul.f32 %v37, 0.03125
    %v48 = vmul.f32 %v42, 0.03125
    %v49 = vmul.f32 %v45, 0.03125
    %v50 = vmul.f32 %v46, %v46
    %v51 = vmul.f32 %v47, %v47
    %v52 = vsub.f32 %v48, %v50
    %v53 = vsub.f32 %v49, %v51
    %v54 = vmax.f32 %v52, 0.0
    %v55 = vmax.f32 %v53, 0.0
    %v56 = vadd.f32 %v54, 1e-05
    %v57 = vadd.f32 %v55, 1e-05
    %v58 = vrsqrt.pop %v56
    %v59 = vrsqrt.pop %v57
    %v60 = vsub.f32 %v29, %v46
    %v61 = vsub.f32 %v30, %v47
    %v62 = vmul.f32 %v60, %v58
    %v63 = vmul.f32 %v61, %v59
    %v64 = vld [vmem:[%s1] sm:$0x1]
    %v66 = vlaneseq
    %v67 = vshrl.u32 %v66, 7
    %v68 = vsub.s32 0, %v67
    %v69 = vrot.slane %v64, %v68
    %v71 = vmul.f32 %v62, %v69
    %v72 = vmul.f32 %v63, %v69
    %v73 = vld [vmem:[%s2] sm:$0x1]
    %v75 = vlaneseq
    %v76 = vshrl.u32 %v75, 7
    %v77 = vsub.s32 0, %v76
    %v78 = vrot.slane %v73, %v77
    %v80 = vadd.f32 %v71, %v78
    %v81 = vadd.f32 %v72, %v78
    %82 = vst.msk [vmem:[#allocation5] sm:$0xff] %vm31, %v80
    %83 = vst.msk [vmem:[#allocation5 + $0x8] sm:$0xff] %vm31, %v81
    // Predicated region
    $region18: #{tpu_custom_call.1} parent=1 // pred_check
      _
    $region19: #{tpu_custom_call.1} parent=1 // pred_check_branch
      %85 = sbr.rel (0) target = $region21
    $region20: #{tpu_custom_call.1} parent=1 // pred_region
      %s87 = ssub.s32 256, 256
      %88 = vsyncadd [#allocation4], %s87
      %s89 = sshll.u32 [#allocation5], 4
      %s90 = int_to_ptr.vmem [resolvable:$true] %s89
      %95 = dma.vmem_to_hbm [thread:$0]  %s90, 256, %s3, [#allocation4], 128, 128, 8
    $region21: #{tpu_custom_call.1} parent=1 // pred_fallthru
      _
    // Predicated region
    $region22: #{tpu_custom_call.1} parent=1 // pred_check
      _
    $region23: #{tpu_custom_call.1} parent=1 // pred_check_branch
      %97 = sbr.rel (0) target = $region25
    $region24: #{tpu_custom_call.1} parent=1 // pred_region
      %98 = dma.done [#allocation4], 256
    $region25: #{tpu_custom_call.1} parent=1 // pred_fallthru
      _
    %99 = vsyncpa [#allocation3], 1
    %100 = vsyncpa [#allocation4], 1

</llo_original>
